<compile_context>
chip_gen: v6e
topology: v6e:2x2x1
jax: 0.10.0
libtpu: 0.0.40
codegen_flags: <defaults>
</compile_context>

<pallas_src>
import jax
import jax.numpy as jnp
from jax.experimental import pallas as pl
from jax.experimental.pallas import tpu as pltpu
import numpy as np

IN_FEATURES = 13
OUT_FEATURES = 26
SUBLANE = 8  # f32 sublane multiple; batch buckets are multiples of this


def _bucket_batch(b):
    # Round batch up to the next sublane multiple so serving-time batch jitter
    # hits a fixed set of compiled shapes (recompiles are ms-scale, kernel is us-scale).
    return max(SUBLANE, ((b + SUBLANE - 1) // SUBLANE) * SUBLANE)


def linear_kernel(x_ref, w_ref, b_ref, o_ref):
    # One MXU pass + bias add, everything resident in VMEM at logical shapes.
    # K=13 / N=26 are handled by Mosaic's internal tile padding + masked store.
    o_ref[...] = (
        jnp.dot(x_ref[...], w_ref[...], preferred_element_type=jnp.float32)
        + b_ref[...]
    )


def make_linear_pallas(weight, bias):
    """Build y = x @ W^T + b as a single pallas_call (no pad/slice on the hot path).

    weight: (out_features, in_features) f32   (nn.Linear layout)
    bias:   (out_features,) f32
    """
    out_f, in_f = weight.shape
    w_t = jnp.asarray(weight, jnp.float32).T                # (13, 26)
    b_row = jnp.asarray(bias, jnp.float32).reshape(1, out_f)  # (1, 26), broadcast over rows

    def _call(x_p):
        bp = x_p.shape[0]
        cost = pl.CostEstimate(
            flops=2 * bp * in_f * out_f,
            transcendentals=0,
            bytes_accessed=(bp * in_f + in_f * out_f + out_f + bp * out_f) * 4,
        )
        # No grid: single invocation, whole-array VMEM blocks.  The problem is
        # one DMA per operand and one MXU pass; grid machinery would be pure
        # overhead at this size.
        return pl.pallas_call(
            linear_kernel,
            out_shape=jax.ShapeDtypeStruct((bp, out_f), jnp.float32),
            in_specs=[
                pl.BlockSpec(memory_space=pltpu.MemorySpace.VMEM),
                pl.BlockSpec(memory_space=pltpu.MemorySpace.VMEM),
                pl.BlockSpec(memory_space=pltpu.MemorySpace.VMEM),
            ],
            out_specs=pl.BlockSpec(memory_space=pltpu.MemorySpace.VMEM),
            cost_estimate=cost,
        )(x_p, w_t, b_row)

    def linear(x):
        x = jnp.asarray(x, jnp.float32)
        b = x.shape[0]
        bp = _bucket_batch(b)
        if bp == b:
            # Hot path: exactly one dispatch, no pad, no slice.
            return _call(x)
        # Off-bucket batch: pad rows to the bucket, slice the logical rows back.
        x_p = jnp.zeros((bp, in_f), jnp.float32).at[:b].set(x)
        return _call(x_p)[:b]

    return linear


if __name__ == "__main__":
    key = jax.random.PRNGKey(0)
    k_x, k_w, k_b = jax.random.split(key, 3)

    BATCH = 8

    # Deterministic parameter init (mimics nn.Linear's uniform(-1/sqrt(fan_in), +)).
    bound = 1.0 / np.sqrt(IN_FEATURES)
    weight = jax.random.uniform(
        k_w, (OUT_FEATURES, IN_FEATURES), jnp.float32, -bound, bound
    )
    bias = jax.random.uniform(k_b, (OUT_FEATURES,), jnp.float32, -bound, bound)

    x = jax.random.normal(k_x, (BATCH, IN_FEATURES), jnp.float32)

    linear = jax.jit(make_linear_pallas(weight, bias))

    y = linear(x)
    jax.block_until_ready(y)

    # Reference check in plain JAX.
    y_ref = x @ weight.T + bias
    np.testing.assert_allclose(np.asarray(y), np.asarray(y_ref), rtol=1e-5, atol=1e-5)

    print("KERNEL_OK")
</pallas_src>

<mosaic_0001>
module attributes {stable_mosaic.version = 11 : i64} {
  func.func @linear_kernel(%arg0: memref<8x13xf32, #tpu.memory_space<vmem>>, %arg1: memref<13x26xf32, #tpu.memory_space<vmem>>, %arg2: memref<1x26xf32, #tpu.memory_space<vmem>>, %arg3: memref<8x26xf32, #tpu.memory_space<vmem>>) attributes {dimension_semantics = [], scalar_prefetch = 0 : i64, scratch_operands = 0 : i64, tpu.core_type = #tpu.core_type<tc>} {
    %c0 = arith.constant 0 : index
    %c0_0 = arith.constant 0 : index
    %0 = vector.load %arg0[%c0, %c0_0] : memref<8x13xf32, #tpu.memory_space<vmem>>, vector<8x13xf32>
    %c0_1 = arith.constant 0 : index
    %c0_2 = arith.constant 0 : index
    %1 = vector.load %arg1[%c0_1, %c0_2] : memref<13x26xf32, #tpu.memory_space<vmem>>, vector<13x26xf32>
    %cst = arith.constant dense<0.000000e+00> : vector<8x26xf32>
    %2 = tpu.matmul %0, %1, %cst {dimension_numbers = #tpu.dot_dimension_numbers<[1], [0], [0], [1], [0, 0, 1, 1], [], []>} : vector<8x13xf32>, vector<13x26xf32>, vector<8x26xf32> -> vector<8x26xf32>
    %c0_3 = arith.constant 0 : index
    %c0_4 = arith.constant 0 : index
    %3 = vector.load %arg2[%c0_3, %c0_4] : memref<1x26xf32, #tpu.memory_space<vmem>>, vector<1x26xf32>
    %4 = vector.broadcast %3 : vector<1x26xf32> to vector<8x26xf32>
    %5 = arith.addf %2, %4 : vector<8x26xf32>
    %c0_5 = arith.constant 0 : index
    %c0_6 = arith.constant 0 : index
    %6 = vector.load %arg3[%c0_5, %c0_6] : memref<8x26xf32, #tpu.memory_space<vmem>>, vector<8x26xf32>
    tpu.vector_store %arg3[%c0_5, %c0_6], %5 {strides = array<i32>} : memref<8x26xf32, #tpu.memory_space<vmem>>, vector<8x26xf32>,
    return
  }
}

</mosaic_0001>

<llo_original>
// kernel: linear.1
$region0: #{linear.1}
  #allocation0 [shape = 'u32[]', space=smem, size = 0x4, offset = 0x4, fixed_abs, tag = 'smem constant byte address 0x4 - core index']
  #allocation1 [shape = 'u32[144,128]{1,0:T(1,128)}', space=vmem, size = 0x12000, scoped, tag = 'internal scratch']
  %s0 = inlined_call_operand.hbm [shape: f32[8,13], index: 0, kind: input, shape index: {}]
  %s1 = inlined_call_operand.hbm [shape: f32[13,26], index: 1, kind: input, shape index: {}]
  %s2 = inlined_call_operand.vmem [shape: f32[1,26], index: 2, kind: input, shape index: {}]
  %s3 = inlined_call_operand.hbm [shape: f32[8,26], index: 3, kind: output, shape index: {}]
  %s4 = sld [smem:[#allocation0]]
  $region30: #{linear.1} parent=0
    _
  %s6 = ssub.s32 1, %s4
  %s7 = scalar_select 0, %s6, %s4
  $region1: #{linear.1} parent=0
    #allocation2 [shape = 'u8[4096]{0}', space=vmem, size = 0x1000, scoped, tag = 'input window, operand 0, single buffered']
    #allocation3 [shape = 's32[1]{0}', space=sflag, size = 0x4, scoped, tag = 'scoped memory for linear.1']
    #allocation4 [shape = 's32[1]{0}', space=sflag, size = 0x4, scoped, tag = 'scoped memory for linear.1']
    #allocation5 [shape = 'u8[8192]{0}', space=vmem, size = 0x2000, scoped, tag = 'input window, operand 1, single buffered']
    #allocation6 [shape = 's32[1]{0}', space=sflag, size = 0x4, scoped, tag = 'scoped memory for linear.1']
    #allocation7 [shape = 'u8[4096]{0}', space=vmem, size = 0x1000, scoped, tag = 'output window, operand 0, single buffered']
    %8 = vsyncpa [#allocation3], 0
    %9 = vsyncpa [#allocation6], 0
    %10 = vsyncpa [#allocation4], 0
    // Predicated region
    $region2: #{linear.1} parent=1 // pred_check
      _
    $region3: #{linear.1} parent=1 // pred_check_branch
      %12 = sbr.rel (0) target = $region5
    $region4: #{linear.1} parent=1 // pred_region
      %s14 = ssub.s32 128, 128
      %15 = vsyncadd [#allocation3], %s14
      %s17 = sshll.u32 [#allocation2], 4
      %s18 = int_to_ptr.vmem [resolvable:$true] %s17
      %20 = dma.hbm_to_vmem [thread:$0]  %s0, 128, %s18, [#allocation3]
    $region5: #{linear.1} parent=1 // pred_fallthru
      _
    // Predicated region
    $region6: #{linear.1} parent=1 // pred_check
      _
    $region7: #{linear.1} parent=1 // pred_check_branch
      %22 = sbr.rel (0) target = $region9
    $region8: #{linear.1} parent=1 // pred_region
      %s24 = ssub.s32 256, 256
      %25 = vsyncadd [#allocation6], %s24
      %s26 = sshll.u32 [#allocation5], 4
      %s27 = int_to_ptr.vmem [resolvable:$true] %s26
      %32 = dma.hbm_to_vmem [thread:$0]  %s1, 256, %s27, [#allocation6], 128, 128, 8
    $region9: #{linear.1} parent=1 // pred_fallthru
      _
    // Predicated region
    $region10: #{linear.1} parent=1 // pred_check
      _
    $region11: #{linear.1} parent=1 // pred_check_branch
      %34 = sbr.rel (0) target = $region13
    $region12: #{linear.1} parent=1 // pred_region
      _
    $region13: #{linear.1} parent=1 // pred_fallthru
      _
    // Predicated region
    $region14: #{linear.1} parent=1 // pred_check
      _
    $region15: #{linear.1} parent=1 // pred_check_branch
      %36 = sbr.rel (0) target = $region17
    $region16: #{linear.1} parent=1 // pred_region
      %37 = dma.done [#allocation3], 128
    $region17: #{linear.1} parent=1 // pred_fallthru
      _
    // Predicated region
    $region18: #{linear.1} parent=1 // pred_check
      _
    $region19: #{linear.1} parent=1 // pred_check_branch
      %39 = sbr.rel (0) target = $region21
    $region20: #{linear.1} parent=1 // pred_region
      %40 = dma.done [#allocation6], 256
    $region21: #{linear.1} parent=1 // pred_fallthru
      _
    %v41 = vld [vmem:[#allocation2] sm:$0xff]
    %v42 = vld [vmem:[#allocation5] sm:$0xff]
    %v43 = vld [vmem:[#allocation5 + $0x8] sm:$0x1f]
    %v44 = vld [vmem:[%s2] sm:$0x1]
    %v46 = vlaneseq
    %v47 = vshrl.u32 %v46, 7
    %v48 = vsub.s32 0, %v47
    %v49 = vrot.slane %v44, %v48
    %vm51 = vcmask 105472
    %v53 = vsel %vm51, %v41, 0
    %vm55 = vcmask 1044480
    %v57 = vsel %vm55, %v43, 0
    %59 = vmatprep.subr.mxu0 0.0
    %60 = vmatpush1.msra.mxu0 0.0
    %61 = vmatprep.subr.mxu0 0.0
    %62 = vmatpush1.msra.mxu0 0.0
    %63 = vmatprep.subr.mxu0 0.0
    %64 = vmatpush1.msra.mxu0 0.0
    %65 = vmatprep.subr.mxu0 0.0
    %66 = vmatpush1.msra.mxu0 0.0
    %67 = vmatprep.subr.mxu0 0.0
    %68 = vmatpush1.msra.mxu0 0.0
    %69 = vmatprep.subr.mxu0 0.0
    %70 = vmatpush1.msra.mxu0 0.0
    %71 = vmatprep.subr.mxu0 0.0
    %72 = vmatpush1.msra.mxu0 0.0
    %73 = vmatprep.subr.mxu0 0.0
    %74 = vmatpush1.msra.mxu0 0.0
    %75 = vmatprep.subr.mxu0 0.0
    %76 = vmatpush1.msra.mxu0 0.0
    %77 = vmatprep.subr.mxu0 0.0
    %78 = vmatpush1.msra.mxu0 0.0
    %79 = vmatprep.subr.mxu0 0.0
    %80 = vmatpush1.msra.mxu0 0.0
    %81 = vmatprep.subr.mxu0 0.0
    %82 = vmatpush1.msra.mxu0 0.0
    %83 = vmatprep.subr.mxu0 0.0
    %84 = vmatpush1.msra.mxu0 0.0
    %85 = vmatprep.subr.mxu0 0.0
    %86 = vmatpush1.msra.mxu0 0.0
    %87 = vmatprep.subr.mxu0 0.0
    %88 = vmatpush1.msra.mxu0 %v57
    %89 = vmatprep.subr.mxu0 0.0
    %90 = vmatpush1.msra.mxu0 %v42
    %91 = vmatprep.subr.mxu0 0.0
    %92 = vmatpush2.msra.mxu0 0.0
    %93 = vmatprep.subr.mxu0 0.0
    %94 = vmatpush2.msra.mxu0 0.0
    %95 = vmatprep.subr.mxu0 0.0
    %96 = vmatpush2.msra.mxu0 0.0
    %97 = vmatprep.subr.mxu0 0.0
    %98 = vmatpush2.msra.mxu0 0.0
    %99 = vmatprep.subr.mxu0 0.0
    %100 = vmatpush2.msra.mxu0 0.0
    %101 = vmatprep.subr.mxu0 0.0
    %102 = vmatpush2.msra.mxu0 0.0
    %103 = vmatprep.subr.mxu0 0.0
    %104 = vmatpush2.msra.mxu0 0.0
    %105 = vmatprep.subr.mxu0 0.0
    %106 = vmatpush2.msra.mxu0 0.0
    %107 = vmatprep.subr.mxu0 0.0
    %108 = vmatpush2.msra.mxu0 0.0
    %109 = vmatprep.subr.mxu0 0.0
    %110 = vmatpush2.msra.mxu0 0.0
    %111 = vmatprep.subr.mxu0 0.0
    %112 = vmatpush2.msra.mxu0 0.0
    %113 = vmatprep.subr.mxu0 0.0
    %114 = vmatpush2.msra.mxu0 0.0
    %115 = vmatprep.subr.mxu0 0.0
    %116 = vmatpush2.msra.mxu0 0.0
    %117 = vmatprep.subr.mxu0 0.0
    %118 = vmatpush2.msra.mxu0 0.0
    %119 = vmatprep.subr.mxu0 0.0
    %120 = vmatpush2.msra.mxu0 0.0
    %121 = vmatprep.subr.mxu0 0.0
    %122 = vmatpush2.msra.mxu0 0.0
    %123 = vmatprep.mubr.f32.mxu0 0.0
    %124 = vmatmul.mubr.f32.gmra.mxu0 %v53
    %v125 = vpop.f32.mrf.mxu0
    %v126 = vadd.f32 %v49, %v125
    %v127 = vpop.f32.mrf.mxu0
    %128 = vdwg.mxu0
    %vm129 = vcmask 211968
    %130 = vst.msk [vmem:[#allocation7] sm:$0xff] %vm129, %v126
    // Predicated region
    $region22: #{linear.1} parent=1 // pred_check
      _
    $region23: #{linear.1} parent=1 // pred_check_branch
      %132 = sbr.rel (0) target = $region25
    $region24: #{linear.1} parent=1 // pred_region
      %s134 = ssub.s32 128, 128
      %135 = vsyncadd [#allocation4], %s134
      %s137 = sshll.u32 [#allocation7], 4
      %s138 = int_to_ptr.vmem [resolvable:$true] %s137
      %140 = dma.vmem_to_hbm [thread:$0]  %s138, 128, %s3, [#allocation4]
    $region25: #{linear.1} parent=1 // pred_fallthru
      _
    // Predicated region
    $region26: #{linear.1} parent=1 // pred_check
      _
    $region27: #{linear.1} parent=1 // pred_check_branch
      %142 = sbr.rel (0) target = $region29
    $region28: #{linear.1} parent=1 // pred_region
      %143 = dma.done [#allocation4], 128
    $region29: #{linear.1} parent=1 // pred_fallthru
      _
    %144 = vsyncpa [#allocation3], 1
    %145 = vsyncpa [#allocation6], 1
    %146 = vsyncpa [#allocation4], 1

</llo_original>
